<compile_context>
chip_gen: v5e
topology: v5e:2x2
jax: 0.10.0
libtpu: 0.0.40
codegen_flags: <defaults>
</compile_context>

<pallas_src>
import math

import jax
import jax.numpy as jnp
from jax.experimental import pallas as pl
from jax.experimental.pallas import tpu as pltpu


_INV_SQRT2 = 1.0 / math.sqrt(2.0)


def _gelu_exact(x):
    # PyTorch nn.GELU default = exact erf-based GELU (computed in f32 here).
    return 0.5 * x * (1.0 + jax.lax.erf(x * _INV_SQRT2))


def _round_up(x, m):
    return ((x + m - 1) // m) * m


def _vmem_capacity_bytes():
    try:
        cap = int(pltpu.get_tpu_info().vmem_capacity_bytes)
        if cap > 0:
            return cap
    except Exception:
        pass
    return 64 << 20  # conservative per-TC default (v7x); v5e/v6e report 128 MiB


# ---------------------------------------------------------------------------
# Kernels
# ---------------------------------------------------------------------------
def _mlp_kernel_resident(x_ref, w1_ref, b1_ref, w2_ref, b2_ref, o_ref):
    # x:(tm,C_in)  w1:(C_in,H)  b1:(1,H) f32  w2:(H,C_out)  b2:(1,C_out) f32
    h = jnp.dot(x_ref[...], w1_ref[...], preferred_element_type=jnp.float32)
    h = _gelu_exact(h + b1_ref[...])
    # Dropout(p=0.0) is the identity in both train and eval -> no-op.
    y = jnp.dot(h.astype(w2_ref.dtype), w2_ref[...],
                preferred_element_type=jnp.float32)
    o_ref[...] = (y + b2_ref[...]).astype(o_ref.dtype)


def _mlp_kernel_streamed(x_ref, w1_ref, b1_ref, w2_ref, b2_ref, o_ref, acc_ref):
    # Inner ("arbitrary") axis streams tH-wide slices of w1/b1/w2; partial fc2
    # products accumulate into an f32 scratch, bias/cast/store happen on the last slab.
    hi = pl.program_id(1)

    @pl.when(hi == 0)
    def _():
        acc_ref[...] = jnp.zeros_like(acc_ref)

    h = jnp.dot(x_ref[...], w1_ref[...], preferred_element_type=jnp.float32)
    h = _gelu_exact(h + b1_ref[...])
    acc_ref[...] += jnp.dot(h.astype(w2_ref.dtype), w2_ref[...],
                            preferred_element_type=jnp.float32)

    @pl.when(hi == pl.num_programs(1) - 1)
    def _():
        o_ref[...] = (acc_ref[...] + b2_ref[...]).astype(o_ref.dtype)


# ---------------------------------------------------------------------------
# Wrapper
# ---------------------------------------------------------------------------
def mlp_pallas(x, w1, b1, w2, b2, *, tm=512, h_tile=None):
    """x: (B, N, C_in) -> (B, N, C_out). fc1 + GELU + fc2 fused in one kernel.

    tm      : row tile over M = B*N (sweep 256/512/1024; clamped & 8-aligned).
    h_tile  : optional forced H tile (must divide H and be a 128-multiple) to
              exercise/force the streamed-weights path; by default it is chosen
              automatically from the VMEM budget.
    """
    B, N, C_in = x.shape
    H = w1.shape[1]
    C_out = w2.shape[1]
    M = B * N

    x2 = x.reshape(M, C_in)                        # free reshape; no pad / slice copies
    b1_2 = b1.reshape(1, H).astype(jnp.float32)    # f32 bias adds into f32 accumulator
    b2_2 = b2.reshape(1, C_out).astype(jnp.float32)

    cap = _vmem_capacity_bytes()
    budget = int(0.85 * cap)                       # per-TC, generation-aware

    # Row tile: multiple of 8 (sublane granularity), never larger than needed.
    # Pallas masks the partial last tile, so M need not divide evenly.
    tm_eff = max(8, min(_round_up(tm, 8), _round_up(M, 8)))

    x_isz = jnp.dtype(x2.dtype).itemsize
    o_isz = jnp.dtype(x.dtype).itemsize
    w_isz = jnp.dtype(w1.dtype).itemsize

    def footprint(tm_, tH, resident):
        nbuf = 1 if resident else 2                         # weight buffers
        b = 2 * tm_ * C_in * x_isz                          # double-buffered x tiles
        b += 2 * tm_ * C_out * o_isz                        # double-buffered out tiles
        b += 0 if resident else tm_ * C_out * 4             # f32 accumulator scratch
        b += nbuf * (C_in * tH + tH * C_out) * w_isz        # weight tiles
        b += nbuf * tH * 4 + C_out * 4                      # f32 biases
        b += tm_ * tH * 4 + tm_ * tH * w_isz                # h (f32) + cast copy for fc2
        return b

    # Choose H tiling: keep weights fully resident (single-buffered) when they fit,
    # otherwise stream tH-wide slices along an inner "arbitrary" axis (v7x: 64 MiB VMEM).
    if (h_tile is not None and h_tile < H and H % h_tile == 0 and h_tile % 128 == 0):
        tH, stream = h_tile, True
    elif footprint(tm_eff, H, True) <= budget or H % 128 != 0:
        tH, stream = H, False
        # TODO(synk): if H is not 128-aligned AND resident weights overflow VMEM,
        # zero-pad w1/b1/w2 along H so the streamed path can be used.
    else:
        k = H // 128
        divs = sorted((128 * m for m in range(1, k) if k % m == 0), reverse=True)
        tH = next((d for d in divs if footprint(tm_eff, d, False) <= budget), 128)
        stream = True
        while footprint(tm_eff, tH, False) > budget and tm_eff > 64:
            tm_eff = max(64, tm_eff // 2)

    n_m = pl.cdiv(M, tm_eff)
    n_h = (H // tH) if stream else 1

    fp = footprint(tm_eff, tH, not stream)
    vmem_limit = int(min(budget, max(32 << 20, int(1.5 * fp))))

    w_bytes = (w1.size * w_isz + w2.size * jnp.dtype(w2.dtype).itemsize
               + b1_2.size * 4 + b2_2.size * 4)
    cost = pl.CostEstimate(
        flops=2 * M * H * (C_in + C_out),
        transcendentals=M * H,
        bytes_accessed=(M * C_in * x_isz + M * C_out * o_isz
                        + (n_m if stream else 1) * w_bytes),
    )

    if not stream:
        kernel = _mlp_kernel_resident
        grid = (n_m,)
        in_specs = [
            pl.BlockSpec((tm_eff, C_in), lambda i: (i, 0)),                       # x tile
            pl.BlockSpec((C_in, H), lambda i: (0, 0), pipeline_mode=pl.Buffered(1)),
            pl.BlockSpec((1, H), lambda i: (0, 0), pipeline_mode=pl.Buffered(1)),
            pl.BlockSpec((H, C_out), lambda i: (0, 0), pipeline_mode=pl.Buffered(1)),
            pl.BlockSpec((1, C_out), lambda i: (0, 0), pipeline_mode=pl.Buffered(1)),
        ]
        out_specs = pl.BlockSpec((tm_eff, C_out), lambda i: (i, 0))
        scratch = []
        dims = ("parallel",)
    else:
        kernel = _mlp_kernel_streamed
        grid = (n_m, n_h)                                       # M parallel, H arbitrary
        in_specs = [
            pl.BlockSpec((tm_eff, C_in), lambda i, h: (i, 0)),  # x tile (resident over h)
            pl.BlockSpec((C_in, tH), lambda i, h: (0, h)),      # w1 column slab (streamed)
            pl.BlockSpec((1, tH), lambda i, h: (0, h)),         # b1 slab
            pl.BlockSpec((tH, C_out), lambda i, h: (h, 0)),     # w2 row slab (streamed)
            pl.BlockSpec((1, C_out), lambda i, h: (0, 0), pipeline_mode=pl.Buffered(1)),
        ]
        out_specs = pl.BlockSpec((tm_eff, C_out), lambda i, h: (i, 0))
        scratch = [pltpu.VMEM((tm_eff, C_out), jnp.float32)]
        dims = ("parallel", "arbitrary")
        # TODO(synk): on v7x, confirm the "parallel" row axis shards across both
        # TensorCores; if not, switch that axis to pltpu.CORE_PARALLEL.

    out = pl.pallas_call(
        kernel,
        out_shape=jax.ShapeDtypeStruct((M, C_out), x.dtype),
        grid_spec=pltpu.PrefetchScalarGridSpec(
            num_scalar_prefetch=0,
            grid=grid,
            in_specs=in_specs,
            out_specs=out_specs,
            scratch_shapes=scratch,
        ),
        compiler_params=pltpu.CompilerParams(
            dimension_semantics=dims,
            vmem_limit_bytes=vmem_limit,
        ),
        cost_estimate=cost,
    )(x2, w1, b1_2, w2, b2_2)

    return out.reshape(B, N, C_out)


def mlp_reference(x, w1, b1, w2, b2):
    h = _gelu_exact(jnp.einsum("bnc,ch->bnh", x, w1) + b1)
    return jnp.einsum("bnh,ho->bno", h, w2) + b2


if __name__ == "__main__":
    key = jax.random.PRNGKey(0)
    kx, kw1, kb1, kw2, kb2, kx2, kw3, kb3, kw4, kb4 = jax.random.split(key, 10)

    # Case 1: small token MLP -> resident-weights path.
    B, N, C_in, H_dim = 2, 8, 16, 32
    C_out = C_in
    lim1 = 1.0 / math.sqrt(C_in)
    lim2 = 1.0 / math.sqrt(H_dim)
    x = jax.random.normal(kx, (B, N, C_in), dtype=jnp.float32)
    w1 = jax.random.uniform(kw1, (C_in, H_dim), jnp.float32, -lim1, lim1)
    b1 = jax.random.uniform(kb1, (H_dim,), jnp.float32, -lim1, lim1)
    w2 = jax.random.uniform(kw2, (H_dim, C_out), jnp.float32, -lim2, lim2)
    b2 = jax.random.uniform(kb2, (C_out,), jnp.float32, -lim2, lim2)

    y = jax.block_until_ready(mlp_pallas(x, w1, b1, w2, b2))
    y_ref = mlp_reference(x, w1, b1, w2, b2)
    assert y.shape == (B, N, C_out)
    assert jnp.allclose(y, y_ref, atol=2e-5, rtol=1e-4)

    # Case 2: row count not a multiple of the tile -> masked partial last row tile
    # (no wrapper-side pad / slice anymore).
    x_odd = jax.random.normal(kx2, (3, 5, C_in), dtype=jnp.float32)
    y2 = jax.block_until_ready(mlp_pallas(x_odd, w1, b1, w2, b2, tm=8))
    y2_ref = mlp_reference(x_odd, w1, b1, w2, b2)
    assert y2.shape == (3, 5, C_out)
    assert jnp.allclose(y2, y2_ref, atol=2e-5, rtol=1e-4)

    # Case 3: force the H-streamed (accumulator) path used for big MLPs on v7x.
    C3, H3 = 64, 256
    lim3 = 1.0 / math.sqrt(C3)
    lim4 = 1.0 / math.sqrt(H3)
    x3 = jax.random.normal(kx, (2, 8, C3), dtype=jnp.float32)
    w3 = jax.random.uniform(kw3, (C3, H3), jnp.float32, -lim3, lim3)
    b3 = jax.random.uniform(kb3, (H3,), jnp.float32, -lim3, lim3)
    w4 = jax.random.uniform(kw4, (H3, C3), jnp.float32, -lim4, lim4)
    b4 = jax.random.uniform(kb4, (C3,), jnp.float32, -lim4, lim4)
    y3 = jax.block_until_ready(mlp_pallas(x3, w3, b3, w4, b4, h_tile=128))
    y3_ref = mlp_reference(x3, w3, b3, w4, b4)
    assert y3.shape == (2, 8, C3)
    assert jnp.allclose(y3, y3_ref, atol=2e-5, rtol=1e-4)

    print("KERNEL_OK")
</pallas_src>

<mosaic_0001>
module attributes {stable_mosaic.version = 11 : i64} {
  func.func @_mlp_kernel_resident(%arg0: i32, %arg1: memref<16x16xf32, #tpu.memory_space<vmem>>, %arg2: memref<16x32xf32, #tpu.memory_space<vmem>>, %arg3: memref<1x32xf32, #tpu.memory_space<vmem>>, %arg4: memref<32x16xf32, #tpu.memory_space<vmem>>, %arg5: memref<1x16xf32, #tpu.memory_space<vmem>>, %arg6: memref<16x16xf32, #tpu.memory_space<vmem>>) attributes {dimension_semantics = [#tpu.dimension_semantics<parallel>], iteration_bounds = array<i64: 1>, scalar_prefetch = 0 : i64, scratch_operands = 0 : i64, tpu.core_type = #tpu.core_type<tc>, window_params = [{transform_indices = @transform_0, window_bounds = array<i64: 16, 16>}, {pipeline_mode = #tpu.pipeline_mode<synchronous>, transform_indices = @transform_1, window_bounds = array<i64: 16, 32>}, {pipeline_mode = #tpu.pipeline_mode<synchronous>, transform_indices = @transform_2, window_bounds = array<i64: 1, 32>}, {pipeline_mode = #tpu.pipeline_mode<synchronous>, transform_indices = @transform_3, window_bounds = array<i64: 32, 16>}, {pipeline_mode = #tpu.pipeline_mode<synchronous>, transform_indices = @transform_4, window_bounds = array<i64: 1, 16>}, {transform_indices = @transform_5, window_bounds = array<i64: 16, 16>}]} {
    %c0 = arith.constant 0 : index
    %c0_0 = arith.constant 0 : index
    %0 = vector.load %arg1[%c0, %c0_0] : memref<16x16xf32, #tpu.memory_space<vmem>>, vector<16x16xf32>
    %c0_1 = arith.constant 0 : index
    %c0_2 = arith.constant 0 : index
    %1 = vector.load %arg2[%c0_1, %c0_2] : memref<16x32xf32, #tpu.memory_space<vmem>>, vector<16x32xf32>
    %cst = arith.constant dense<0.000000e+00> : vector<16x32xf32>
    %2 = tpu.matmul %0, %1, %cst {dimension_numbers = #tpu.dot_dimension_numbers<[1], [0], [0], [1], [0, 0, 1, 1], [], []>} : vector<16x16xf32>, vector<16x32xf32>, vector<16x32xf32> -> vector<16x32xf32>
    %c0_3 = arith.constant 0 : index
    %c0_4 = arith.constant 0 : index
    %3 = vector.load %arg3[%c0_3, %c0_4] : memref<1x32xf32, #tpu.memory_space<vmem>>, vector<1x32xf32>
    %4 = vector.broadcast %3 : vector<1x32xf32> to vector<16x32xf32>
    %5 = arith.addf %2, %4 : vector<16x32xf32>
    %cst_5 = arith.constant 5.000000e-01 : f32
    %6 = vector.broadcast %cst_5 : f32 to vector<16x32xf32>
    %7 = arith.mulf %6, %5 : vector<16x32xf32>
    %cst_6 = arith.constant 0.707106769 : f32
    %8 = vector.broadcast %cst_6 : f32 to vector<16x32xf32>
    %9 = arith.mulf %5, %8 : vector<16x32xf32>
    %10 = math.erf %9 : vector<16x32xf32>
    %cst_7 = arith.constant 1.000000e+00 : f32
    %11 = vector.broadcast %cst_7 : f32 to vector<16x32xf32>
    %12 = arith.addf %11, %10 : vector<16x32xf32>
    %13 = arith.mulf %7, %12 : vector<16x32xf32>
    %c0_8 = arith.constant 0 : index
    %c0_9 = arith.constant 0 : index
    %14 = vector.load %arg4[%c0_8, %c0_9] : memref<32x16xf32, #tpu.memory_space<vmem>>, vector<32x16xf32>
    %cst_10 = arith.constant dense<0.000000e+00> : vector<16x16xf32>
    %15 = tpu.matmul %13, %14, %cst_10 {dimension_numbers = #tpu.dot_dimension_numbers<[1], [0], [0], [1], [0, 0, 1, 1], [], []>} : vector<16x32xf32>, vector<32x16xf32>, vector<16x16xf32> -> vector<16x16xf32>
    %c0_11 = arith.constant 0 : index
    %c0_12 = arith.constant 0 : index
    %16 = vector.load %arg5[%c0_11, %c0_12] : memref<1x16xf32, #tpu.memory_space<vmem>>, vector<1x16xf32>
    %17 = vector.broadcast %16 : vector<1x16xf32> to vector<16x16xf32>
    %18 = arith.addf %15, %17 : vector<16x16xf32>
    %c0_13 = arith.constant 0 : index
    %c0_14 = arith.constant 0 : index
    %19 = vector.load %arg6[%c0_13, %c0_14] : memref<16x16xf32, #tpu.memory_space<vmem>>, vector<16x16xf32>
    tpu.vector_store %arg6[%c0_13, %c0_14], %18 {strides = array<i32>} : memref<16x16xf32, #tpu.memory_space<vmem>>, vector<16x16xf32>,
    return
  }
  func.func @transform_0(%arg0: i32) -> (i32, i32) {
    %c0_i32 = arith.constant 0 : i32
    %c0_i32_0 = arith.constant 0 : i32
    return %arg0, %c0_i32 : i32, i32
  }
  func.func @transform_1(%arg0: i32) -> (i32, i32) {
    %c0_i32 = arith.constant 0 : i32
    %c0_i32_0 = arith.constant 0 : i32
    %c0_i32_1 = arith.constant 0 : i32
    return %c0_i32, %c0_i32_0 : i32, i32
  }
  func.func @transform_2(%arg0: i32) -> (i32, i32) {
    %c0_i32 = arith.constant 0 : i32
    %c0_i32_0 = arith.constant 0 : i32
    %c0_i32_1 = arith.constant 0 : i32
    return %c0_i32, %c0_i32_0 : i32, i32
  }
  func.func @transform_3(%arg0: i32) -> (i32, i32) {
    %c0_i32 = arith.constant 0 : i32
    %c0_i32_0 = arith.constant 0 : i32
    %c0_i32_1 = arith.constant 0 : i32
    return %c0_i32, %c0_i32_0 : i32, i32
  }
  func.func @transform_4(%arg0: i32) -> (i32, i32) {
    %c0_i32 = arith.constant 0 : i32
    %c0_i32_0 = arith.constant 0 : i32
    %c0_i32_1 = arith.constant 0 : i32
    return %c0_i32, %c0_i32_0 : i32, i32
  }
  func.func @transform_5(%arg0: i32) -> (i32, i32) {
    %c0_i32 = arith.constant 0 : i32
    %c0_i32_0 = arith.constant 0 : i32
    return %arg0, %c0_i32 : i32, i32
  }
}

</mosaic_0001>

<llo_original>
// kernel: tpu_custom_call.1
$region0: #{tpu_custom_call.1}
  #allocation0 [shape = 'u32[]', space=smem, size = 0x4, offset = 0x4, fixed_abs, tag = 'smem constant byte address 0x4 - core index']
  #allocation1 [shape = 'u32[72,128]{1,0:T(1,128)}', space=vmem, size = 0x9000, scoped, tag = 'internal scratch']
  %s0 = inlined_call_operand.vmem [shape: f32[16,16], index: 0, kind: input, shape index: {}]
  %s1 = inlined_call_operand.vmem [shape: f32[16,32], index: 1, kind: input, shape index: {}]
  %s2 = inlined_call_operand.vmem [shape: f32[1,32], index: 2, kind: input, shape index: {}]
  %s3 = inlined_call_operand.vmem [shape: f32[32,16], index: 3, kind: input, shape index: {}]
  %s4 = inlined_call_operand.vmem [shape: f32[1,16], index: 4, kind: input, shape index: {}]
  %s5 = inlined_call_operand.hbm [shape: f32[16,16], index: 5, kind: output, shape index: {}]
  %s6 = sld [smem:[#allocation0]]
  $region30: #{tpu_custom_call.1} parent=0
    _
  %s8 = ssub.s32 1, %s6
  %s9 = scalar_select 0, %s8, %s6
  $region1: #{tpu_custom_call.1} parent=0
    #allocation2 [shape = 'u8[8192]{0}', space=vmem, size = 0x2000, scoped, tag = 'output window, operand 0, single buffered']
    #allocation3 [shape = 's32[1]{0}', space=sflag, size = 0x4, scoped, tag = 'scoped memory for tpu_custom_call.1']
    %10 = vsyncpa [#allocation3], 0
    // Predicated region
    $region2: #{tpu_custom_call.1} parent=1 // pred_check
      _
    $region3: #{tpu_custom_call.1} parent=1 // pred_check_branch
      %12 = sbr.rel (0) target = $region5
    $region4: #{tpu_custom_call.1} parent=1 // pred_region
      _
    $region5: #{tpu_custom_call.1} parent=1 // pred_fallthru
      _
    // Predicated region
    $region6: #{tpu_custom_call.1} parent=1 // pred_check
      _
    $region7: #{tpu_custom_call.1} parent=1 // pred_check_branch
      %14 = sbr.rel (0) target = $region9
    $region8: #{tpu_custom_call.1} parent=1 // pred_region
      _
    $region9: #{tpu_custom_call.1} parent=1 // pred_fallthru
      _
    // Predicated region
    $region10: #{tpu_custom_call.1} parent=1 // pred_check
      _
    $region11: #{tpu_custom_call.1} parent=1 // pred_check_branch
      %16 = sbr.rel (0) target = $region13
    $region12: #{tpu_custom_call.1} parent=1 // pred_region
      _
    $region13: #{tpu_custom_call.1} parent=1 // pred_fallthru
      _
    // Predicated region
    $region14: #{tpu_custom_call.1} parent=1 // pred_check
      _
    $region15: #{tpu_custom_call.1} parent=1 // pred_check_branch
      %18 = sbr.rel (0) target = $region17
    $region16: #{tpu_custom_call.1} parent=1 // pred_region
      _
    $region17: #{tpu_custom_call.1} parent=1 // pred_fallthru
      _
    // Predicated region
    $region18: #{tpu_custom_call.1} parent=1 // pred_check
      _
    $region19: #{tpu_custom_call.1} parent=1 // pred_check_branch
      %20 = sbr.rel (0) target = $region21
    $region20: #{tpu_custom_call.1} parent=1 // pred_region
      _
    $region21: #{tpu_custom_call.1} parent=1 // pred_fallthru
      _
    %v21 = vld [vmem:[%s0] sm:$0xff]
    %v22 = vld [vmem:[%s0 + $0x8] sm:$0xff]
    %v23 = vld [vmem:[%s1] sm:$0xff]
    %v24 = vld [vmem:[%s1 + $0x8] sm:$0xff]
    %v25 = vld [vmem:[%s2] sm:$0x1]
    %v27 = vperm.slane %v25, 0
    %vm29 = vcmask 130048
    %v31 = vsel %vm29, %v21, 0
    %v34 = vsel %vm29, %v22, 0
    %36 = vmatpush.msra.mxu0 0.0
    %37 = vmatpush.msra.mxu0 0.0
    %38 = vmatpush.msra.mxu0 0.0
    %39 = vmatpush.msra.mxu0 0.0
    %40 = vmatpush.msra.mxu0 0.0
    %41 = vmatpush.msra.mxu0 0.0
    %42 = vmatpush.msra.mxu0 0.0
    %43 = vmatpush.msra.mxu0 0.0
    %44 = vmatpush.msra.mxu0 0.0
    %45 = vmatpush.msra.mxu0 0.0
    %46 = vmatpush.msra.mxu0 0.0
    %47 = vmatpush.msra.mxu0 0.0
    %48 = vmatpush.msra.mxu0 0.0
    %49 = vmatpush.msra.mxu0 0.0
    %50 = vmatpush.msra.mxu0 %v24
    %51 = vmatpush.msra.mxu0 %v23
    %52 = vmatmul.f32.gmra.mxu0 %v31
    %v53 = vpop.f32.mrf.mxu0
    %v54 = vadd.f32 %v27, %v53
    %55 = vmatmul.f32.gmra.mxu0 %v34
    %v56 = vpop.f32.mrf.mxu0
    %v57 = vadd.f32 %v27, %v56
    %58 = vdwg.mxu0
    %v59 = vmul.f32 %v54, 0.5
    %v60 = vmul.f32 %v57, 0.5
    %v61 = vmul.f32 %v54, 0.70710677
    %v62 = vmul.f32 %v57, 0.70710677
    %v63 = vmul.f32 %v61, %v61
    %v64 = vmin.f32 16.0, %v63
    %v65 = vmul.f32 %v64, 2.1237322e-06
    %v66 = vadd.f32 %v65, 0.00028619796
    %v67 = vmul.f32 %v64, %v66
    %v68 = vadd.f32 %v67, 0.0036580483
    %v69 = vmul.f32 %v64, %v68
    %v70 = vadd.f32 %v69, 0.05243302
    %v71 = vmul.f32 %v64, %v70
    %v72 = vadd.f32 %v71, 0.18741608
    %v73 = vmul.f32 %v64, %v72
    %v74 = vadd.f32 %v73, 1.1283791
    %v75 = vmul.f32 %v61, %v74
    %v76 = vmul.f32 %v64, 3.8918573e-05
    %v77 = vadd.f32 %v76, 0.001143296
    %v78 = vmul.f32 %v64, %v77
    %v79 = vadd.f32 %v78, 0.014752088
    %v80 = vmul.f32 %v64, %v79
    %v81 = vadd.f32 %v80, 0.112945676
    %v82 = vmul.f32 %v64, %v81
    %v83 = vadd.f32 %v82, 0.4994258
    %v84 = vmul.f32 %v64, %v83
    %v85 = vadd.f32 %v84, 1.0
    %v86 = vrcp.pop %v85
    %v87 = vmul.f32 %v85, %v86
    %v88 = vsub.f32 1.0, %v87
    %v89 = vmul.f32 %v86, %v88
    %v90 = vadd.f32 %v86, %v89
    %vm91 = vweird.f32 %v85
    %vm92 = vweird.f32 %v86
    %vm93 = vmor %vm91, %vm92
    %v94 = vsel %vm93, %v86, %v90
    %v95 = vand.u32 2147483647, %v85
    %vm96 = vcmp.eq.f32.partialorder %v95, 8.507059e+37
    %v97 = vand.u32 %v85, 2147483648
    %v98 = vor.u32 1.1754944e-38, %v97
    %v99 = vsel %vm96, %v98, %v94
    %v100 = vmul.f32 %v75, %v99
    %v101 = vmin.f32 %v100, 1.0
    %v102 = vmax.f32 %v101, -1.0
    %v103 = vmul.f32 %v62, %v62
    %v104 = vmin.f32 16.0, %v103
    %v105 = vmul.f32 %v104, 2.1237322e-06
    %v106 = vadd.f32 %v105, 0.00028619796
    %v107 = vmul.f32 %v104, %v106
    %v108 = vadd.f32 %v107, 0.0036580483
    %v109 = vmul.f32 %v104, %v108
    %v110 = vadd.f32 %v109, 0.05243302
    %v111 = vmul.f32 %v104, %v110
    %v112 = vadd.f32 %v111, 0.18741608
    %v113 = vmul.f32 %v104, %v112
    %v114 = vadd.f32 %v113, 1.1283791
    %v115 = vmul.f32 %v62, %v114
    %v116 = vmul.f32 %v104, 3.8918573e-05
    %v117 = vadd.f32 %v116, 0.001143296
    %v118 = vmul.f32 %v104, %v117
    %v119 = vadd.f32 %v118, 0.014752088
    %v120 = vmul.f32 %v104, %v119
    %v121 = vadd.f32 %v120, 0.112945676
    %v122 = vmul.f32 %v104, %v121
    %v123 = vadd.f32 %v122, 0.4994258
    %v124 = vmul.f32 %v104, %v123
    %v125 = vadd.f32 %v124, 1.0
    %v126 = vrcp.pop %v125
    %v127 = vmul.f32 %v125, %v126
    %v128 = vsub.f32 1.0, %v127
    %v129 = vmul.f32 %v126, %v128
    %v130 = vadd.f32 %v126, %v129
    %vm131 = vweird.f32 %v125
    %vm132 = vweird.f32 %v126
    %vm133 = vmor %vm131, %vm132
    %v134 = vsel %vm133, %v126, %v130
    %v135 = vand.u32 2147483647, %v125
    %vm136 = vcmp.eq.f32.partialorder %v135, 8.507059e+37
    %v137 = vand.u32 %v125, 2147483648
    %v138 = vor.u32 1.1754944e-38, %v137
    %v139 = vsel %vm136, %v138, %v134
    %v140 = vmul.f32 %v115, %v139
    %v141 = vmin.f32 %v140, 1.0
    %v142 = vmax.f32 %v141, -1.0
    %v143 = vadd.f32 %v102, 1.0
    %v144 = vadd.f32 %v142, 1.0
    %v145 = vmul.f32 %v59, %v143
    %v146 = vmul.f32 %v60, %v144
    %v147 = vld [vmem:[%s3] sm:$0xff]
    %v148 = vld [vmem:[%s3 + $0x8] sm:$0xff]
    %v149 = vld [vmem:[%s3 + $0x10] sm:$0xff]
    %v150 = vld [vmem:[%s3 + $0x18] sm:$0xff]
    %v151 = vld [vmem:[%s4] sm:$0x1]
    %v153 = vperm.slane %v151, 0
    %vm155 = vcmask 261120
    %v157 = vsel %vm155, %v145, 0
    %v160 = vsel %vm155, %v146, 0
    %162 = vmatpush.msra.mxu0 0.0
    %163 = vmatpush.msra.mxu0 0.0
    %164 = vmatpush.msra.mxu0 0.0
    %165 = vmatpush.msra.mxu0 0.0
    %166 = vmatpush.msra.mxu0 0.0
    %167 = vmatpush.msra.mxu0 0.0
    %168 = vmatpush.msra.mxu0 0.0
    %169 = vmatpush.msra.mxu0 0.0
    %170 = vmatpush.msra.mxu0 0.0
    %171 = vmatpush.msra.mxu0 0.0
    %172 = vmatpush.msra.mxu0 0.0
    %173 = vmatpush.msra.mxu0 0.0
    %174 = vmatpush.msra.mxu0 %v150
    %175 = vmatpush.msra.mxu0 %v149
    %176 = vmatpush.msra.mxu0 %v148
    %177 = vmatpush.msra.mxu0 %v147
    %178 = vmatmul.f32.gmra.mxu0 %v157
    %v179 = vpop.f32.mrf.mxu0
    %v180 = vadd.f32 %v153, %v179
    %181 = vmatmul.f32.gmra.mxu0 %v160
    %v182 = vpop.f32.mrf.mxu0
    %v183 = vadd.f32 %v153, %v182
    %184 = vdwg.mxu0
    %185 = vst.msk [vmem:[#allocation2] sm:$0xff] %vm29, %v180
    %186 = vst.msk [vmem:[#allocation2 + $0x8] sm:$0xff] %vm29, %v183
    // Predicated region
    $region22: #{tpu_custom_call.1} parent=1 // pred_check
      _
    $region23: #{tpu_custom_call.1} parent=1 // pred_check_branch
      %188 = sbr.rel (0) target = $region25
    $region24: #{tpu_custom_call.1} parent=1 // pred_region
      %190 = vsyncadd [#allocation3], 0
      %s191 = sshll.u32 [#allocation2], 4
      %s192 = int_to_ptr.vmem [resolvable:$true] %s191
      %s193 = sshll.u32 %s5, 4
      %s194 = int_to_ptr.hbm [resolvable:$true] %s193
      %199 = dma.vmem_to_hbm [thread:$0]  %s192, 256, %s194, [#allocation3], 128, 128, 8
    $region25: #{tpu_custom_call.1} parent=1 // pred_fallthru
      _
    // Predicated region
    $region26: #{tpu_custom_call.1} parent=1 // pred_check
      _
    $region27: #{tpu_custom_call.1} parent=1 // pred_check_branch
      %201 = sbr.rel (0) target = $region29
    $region28: #{tpu_custom_call.1} parent=1 // pred_region
      %203 = dma.done [#allocation3], 256
    $region29: #{tpu_custom_call.1} parent=1 // pred_fallthru
      _
    %204 = vsyncpa [#allocation3], 1

</llo_original>
